<compile_context>
chip_gen: v7x
topology: tpu7x:2x2x1
jax: 0.10.0
libtpu: 0.0.40
codegen_flags: <defaults>
</compile_context>

<pallas_src>
import math
import functools

import jax
import jax.numpy as jnp
from jax.experimental import pallas as pl
from jax.experimental.pallas import tpu as pltpu


def _round_up(x: int, m: int) -> int:
    return (x + m - 1) // m * m


# ---------------------------------------------------------------------------
# Kernels
# ---------------------------------------------------------------------------
def _gcn_fused_kernel(a_ref, x_ref, w_ref, out_ref, acc_ref):
    """K-tiled (A @ X) @ W for one output row-tile.

    Grid = (row tiles, K tiles).  A (tm, tk) tiles stream along K and are
    accumulated in f32 VMEM scratch (tm, in_pad); on the last K step the small
    epilogue matmul with W (in_pad, out_pad) writes the output row tile.
    """
    k = pl.program_id(1)

    @pl.when(k == 0)
    def _init():
        acc_ref[...] = jnp.zeros_like(acc_ref)

    acc_ref[...] += jnp.dot(a_ref[...], x_ref[...],
                            preferred_element_type=jnp.float32)

    @pl.when(k == pl.num_programs(1) - 1)
    def _finalize():
        ax = acc_ref[...].astype(w_ref.dtype)
        out_ref[...] = jnp.dot(
            ax, w_ref[...], preferred_element_type=jnp.float32
        ).astype(out_ref.dtype)


def _matmul_kernel(a_ref, b_ref, out_ref, acc_ref):
    """K-tiled A @ B (used when inp is None: out = A @ W)."""
    k = pl.program_id(1)

    @pl.when(k == 0)
    def _init():
        acc_ref[...] = jnp.zeros_like(acc_ref)

    acc_ref[...] += jnp.dot(a_ref[...], b_ref[...],
                            preferred_element_type=jnp.float32)

    @pl.when(k == pl.num_programs(1) - 1)
    def _finalize():
        out_ref[...] = acc_ref[...].astype(out_ref.dtype)


# ---------------------------------------------------------------------------
# Wrapper (mirrors GraphConv.forward semantics)
# ---------------------------------------------------------------------------
@functools.partial(jax.jit, static_argnames=("tm", "tk", "compute_dtype"))
def graph_conv_forward(adj_matrix, weight, inp=None, *,
                       tm=256, tk=512, compute_dtype=jnp.bfloat16):
    """Pallas implementation of GraphConv.forward: (A @ X) @ W.

    If `inp` is None, X is the identity, i.e. return A @ W.
    A, X, W are cast to `compute_dtype` (bf16 by default) and zero-padded to
    tile-aligned shapes; accumulation is always f32 and the result is returned
    in the adjacency dtype at the original (unpadded) shape.
    """
    n_vert = adj_matrix.shape[0]
    out_size = weight.shape[1]
    out_dtype = adj_matrix.dtype

    # Tile sizes, clamped so small graphs are not grossly over-padded.
    tm = min(tm, _round_up(n_vert, 8))        # row tile (sublane-aligned)
    tk = min(tk, _round_up(n_vert, 128))      # K tile (lane-aligned)

    rows_pad = _round_up(n_vert, tm)
    k_pad = _round_up(n_vert, tk)
    out_pad = _round_up(out_size, 128)

    # Cast + zero-pad A.  Zero padding is exact: padded A columns hit padded
    # X/W rows (zero), padded A rows / output columns are sliced off below.
    a = jnp.pad(adj_matrix.astype(compute_dtype),
                ((0, rows_pad - n_vert), (0, k_pad - n_vert)))

    nbytes_cd = jnp.dtype(compute_dtype).itemsize
    nbytes_out = jnp.dtype(out_dtype).itemsize

    # VMEM footprint is tiny (~1.5 MiB at tm=256, tk=512 in bf16); the
    # explicit 32 MiB limit just guarantees headroom for double-buffering
    # the A stream on every generation (fits v5e/v6e/v7x).
    compiler_params = pltpu.CompilerParams(
        dimension_semantics=("parallel", "arbitrary"),
        vmem_limit_bytes=32 * 1024 * 1024,
    )

    if inp is None:
        # out = A @ W, with W: (num_vertices, output_size)
        w = jnp.pad(weight.astype(compute_dtype),
                    ((0, k_pad - n_vert), (0, out_pad - out_size)))

        cost = pl.CostEstimate(
            flops=2 * n_vert * n_vert * out_size,
            transcendentals=0,
            bytes_accessed=(n_vert * n_vert + n_vert * out_size) * nbytes_cd
                           + n_vert * out_size * nbytes_out,
        )

        out = pl.pallas_call(
            _matmul_kernel,
            out_shape=jax.ShapeDtypeStruct((rows_pad, out_pad), out_dtype),
            grid_spec=pltpu.PrefetchScalarGridSpec(
                num_scalar_prefetch=0,
                grid=(rows_pad // tm, k_pad // tk),
                in_specs=[
                    pl.BlockSpec((tm, tk), lambda i, k: (i, k)),        # A
                    pl.BlockSpec((tk, out_pad), lambda i, k: (k, 0)),   # W
                ],
                out_specs=pl.BlockSpec((tm, out_pad), lambda i, k: (i, 0)),
                scratch_shapes=[pltpu.VMEM((tm, out_pad), jnp.float32)],
            ),
            compiler_params=compiler_params,
            cost_estimate=cost,
        )(a, w)
        return out[:n_vert, :out_size]

    in_size = inp.shape[1]
    in_pad = _round_up(in_size, 128)

    x = jnp.pad(inp.astype(compute_dtype),
                ((0, k_pad - n_vert), (0, in_pad - in_size)))
    w = jnp.pad(weight.astype(compute_dtype),
                ((0, in_pad - in_size), (0, out_pad - out_size)))

    cost = pl.CostEstimate(
        flops=2 * n_vert * n_vert * in_size + 2 * n_vert * in_size * out_size,
        transcendentals=0,
        bytes_accessed=(n_vert * n_vert + n_vert * in_size
                        + in_size * out_size) * nbytes_cd
                       + n_vert * out_size * nbytes_out,
    )

    out = pl.pallas_call(
        _gcn_fused_kernel,
        out_shape=jax.ShapeDtypeStruct((rows_pad, out_pad), out_dtype),
        grid_spec=pltpu.PrefetchScalarGridSpec(
            num_scalar_prefetch=0,
            grid=(rows_pad // tm, k_pad // tk),
            in_specs=[
                pl.BlockSpec((tm, tk), lambda i, k: (i, k)),           # A tile
                pl.BlockSpec((tk, in_pad), lambda i, k: (k, 0)),       # X K-slab
                # W is tiny (in_pad x out_pad, ~32 KiB bf16) so keeping it
                # effectively resident costs nothing even when double-buffered.
                pl.BlockSpec((in_pad, out_pad), lambda i, k: (0, 0)),  # W
            ],
            out_specs=pl.BlockSpec((tm, out_pad), lambda i, k: (i, 0)),
            scratch_shapes=[pltpu.VMEM((tm, in_pad), jnp.float32)],
        ),
        compiler_params=compiler_params,
        cost_estimate=cost,
    )(a, x, w)
    return out[:n_vert, :out_size]


# ---------------------------------------------------------------------------
# Deterministic parameter init (matches nn.init.kaiming_uniform_(w, a=sqrt(5)))
# ---------------------------------------------------------------------------
def init_graph_conv_weight(key, input_size, output_size):
    # PyTorch: for a 2-D tensor of shape (input_size, output_size),
    #   fan_in = tensor.size(1) = output_size, gain = sqrt(1/3) with a=sqrt(5)
    #   bound  = gain * sqrt(3 / fan_in) = 1 / sqrt(fan_in)
    bound = 1.0 / math.sqrt(output_size)
    return jax.random.uniform(key, (input_size, output_size),
                              dtype=jnp.float32, minval=-bound, maxval=bound)


# ---------------------------------------------------------------------------
# Demo / self-test
# ---------------------------------------------------------------------------
if __name__ == "__main__":
    key = jax.random.PRNGKey(0)
    k_adj, k_inp, k_w, k_wid = jax.random.split(key, 4)

    # Deliberately NOT multiples of 8 / 128, to exercise the padding path.
    num_vertices = 200
    input_size = 48
    output_size = 96

    adj = jax.random.uniform(k_adj, (num_vertices, num_vertices),
                             dtype=jnp.float32)
    x = jax.random.normal(k_inp, (num_vertices, input_size), dtype=jnp.float32)
    weight = init_graph_conv_weight(k_w, input_size, output_size)

    ref = (adj @ x) @ weight

    # Path 1a: inp provided -> (A @ X) @ W, bf16 MXU path (default).
    out_bf16 = jax.block_until_ready(graph_conv_forward(adj, weight, x))
    assert out_bf16.shape == (num_vertices, output_size)
    assert out_bf16.dtype == jnp.float32
    assert jnp.allclose(out_bf16, ref, atol=1e-1, rtol=1e-1), \
        "fused AXW (bf16) mismatch"

    # Path 1b: same, f32 compute path, tight tolerance.
    out_f32 = jax.block_until_ready(
        graph_conv_forward(adj, weight, x, compute_dtype=jnp.float32))
    assert jnp.allclose(out_f32, ref, atol=1e-3, rtol=1e-3), \
        "fused AXW (f32) mismatch"

    # Path 2: inp is None -> A @ W (weight has input_size == num_vertices).
    weight_id = init_graph_conv_weight(k_wid, num_vertices, output_size)
    out_id = jax.block_until_ready(graph_conv_forward(adj, weight_id, None))
    ref_id = adj @ weight_id
    assert out_id.shape == (num_vertices, output_size)
    assert jnp.allclose(out_id, ref_id, atol=5e-2, rtol=5e-2), \
        "AW (bf16) mismatch"

    print("KERNEL_OK")
</pallas_src>

<mosaic_0001>
module attributes {stable_mosaic.version = 11 : i64} {
  func.func @_gcn_fused_kernel(%arg0: i32, %arg1: i32, %arg2: memref<200x256xbf16, #tpu.memory_space<vmem>>, %arg3: memref<256x128xbf16, #tpu.memory_space<vmem>>, %arg4: memref<128x128xbf16, #tpu.memory_space<vmem>>, %arg5: memref<200x128xf32, #tpu.memory_space<vmem>>, %arg6: memref<200x128xf32, #tpu.memory_space<vmem>>) attributes {dimension_semantics = [#tpu.dimension_semantics<parallel>, #tpu.dimension_semantics<arbitrary>], iteration_bounds = array<i64: 1, 1>, scalar_prefetch = 0 : i64, scratch_operands = 1 : i64, tpu.core_type = #tpu.core_type<tc>, window_params = [{transform_indices = @transform_0, window_bounds = array<i64: 200, 256>}, {transform_indices = @transform_1, window_bounds = array<i64: 256, 128>}, {pipeline_mode = #tpu.pipeline_mode<synchronous>, transform_indices = @transform_2, window_bounds = array<i64: 128, 128>}, {transform_indices = @transform_3, window_bounds = array<i64: 200, 128>}]} {
    %c0_i32 = arith.constant 0 : i32
    %0 = arith.cmpi eq, %arg1, %c0_i32 : i32
    %1 = arith.extui %0 : i1 to i32
    %c0_i32_0 = arith.constant 0 : i32
    %2 = arith.cmpi ne, %1, %c0_i32_0 : i32
    scf.if %2 {
      %cst_10 = arith.constant 0.000000e+00 : f32
      %12 = vector.broadcast %cst_10 : f32 to vector<200x128xf32>
      %c0_11 = arith.constant 0 : index
      %c0_12 = arith.constant 0 : index
      %13 = vector.load %arg6[%c0_11, %c0_12] : memref<200x128xf32, #tpu.memory_space<vmem>>, vector<200x128xf32>
      tpu.vector_store %arg6[%c0_11, %c0_12], %12 {strides = array<i32>} : memref<200x128xf32, #tpu.memory_space<vmem>>, vector<200x128xf32>,
    } else {
    }
    %c0 = arith.constant 0 : index
    %c0_1 = arith.constant 0 : index
    %3 = vector.load %arg6[%c0, %c0_1] : memref<200x128xf32, #tpu.memory_space<vmem>>, vector<200x128xf32>
    %c0_2 = arith.constant 0 : index
    %c0_3 = arith.constant 0 : index
    %4 = vector.load %arg2[%c0_2, %c0_3] : memref<200x256xbf16, #tpu.memory_space<vmem>>, vector<200x256xbf16>
    %c0_4 = arith.constant 0 : index
    %c0_5 = arith.constant 0 : index
    %5 = vector.load %arg3[%c0_4, %c0_5] : memref<256x128xbf16, #tpu.memory_space<vmem>>, vector<256x128xbf16>
    %cst = arith.constant dense<0.000000e+00> : vector<200x128xf32>
    %6 = tpu.matmul %4, %5, %cst {dimension_numbers = #tpu.dot_dimension_numbers<[1], [0], [0], [1], [0, 0, 1, 1], [], []>} : vector<200x256xbf16>, vector<256x128xbf16>, vector<200x128xf32> -> vector<200x128xf32>
    %7 = arith.addf %3, %6 : vector<200x128xf32>
    %c0_6 = arith.constant 0 : index
    %c0_7 = arith.constant 0 : index
    %8 = vector.load %arg6[%c0_6, %c0_7] : memref<200x128xf32, #tpu.memory_space<vmem>>, vector<200x128xf32>
    tpu.vector_store %arg6[%c0_6, %c0_7], %7 {strides = array<i32>} : memref<200x128xf32, #tpu.memory_space<vmem>>, vector<200x128xf32>,
    %c0_i32_8 = arith.constant 0 : i32
    %9 = arith.cmpi eq, %arg1, %c0_i32_8 : i32
    %10 = arith.extui %9 : i1 to i32
    %c0_i32_9 = arith.constant 0 : i32
    %11 = arith.cmpi ne, %10, %c0_i32_9 : i32
    scf.if %11 {
      %c0_10 = arith.constant 0 : index
      %c0_11 = arith.constant 0 : index
      %12 = vector.load %arg6[%c0_10, %c0_11] : memref<200x128xf32, #tpu.memory_space<vmem>>, vector<200x128xf32>
      %13 = arith.truncf %12 : vector<200x128xf32> to vector<200x128xbf16>
      %c0_12 = arith.constant 0 : index
      %c0_13 = arith.constant 0 : index
      %14 = vector.load %arg4[%c0_12, %c0_13] : memref<128x128xbf16, #tpu.memory_space<vmem>>, vector<128x128xbf16>
      %cst_14 = arith.constant dense<0.000000e+00> : vector<200x128xf32>
      %15 = tpu.matmul %13, %14, %cst_14 {dimension_numbers = #tpu.dot_dimension_numbers<[1], [0], [0], [1], [0, 0, 1, 1], [], []>} : vector<200x128xbf16>, vector<128x128xbf16>, vector<200x128xf32> -> vector<200x128xf32>
      %c0_15 = arith.constant 0 : index
      %c0_16 = arith.constant 0 : index
      %16 = vector.load %arg5[%c0_15, %c0_16] : memref<200x128xf32, #tpu.memory_space<vmem>>, vector<200x128xf32>
      tpu.vector_store %arg5[%c0_15, %c0_16], %15 {strides = array<i32>} : memref<200x128xf32, #tpu.memory_space<vmem>>, vector<200x128xf32>,
    } else {
    }
    return
  }
  func.func @transform_0(%arg0: i32, %arg1: i32) -> (i32, i32) {
    %c0_i32 = arith.constant 0 : i32
    return %arg0, %arg1 : i32, i32
  }
  func.func @transform_1(%arg0: i32, %arg1: i32) -> (i32, i32) {
    %c0_i32 = arith.constant 0 : i32
    %c0_i32_0 = arith.constant 0 : i32
    return %arg1, %c0_i32 : i32, i32
  }
  func.func @transform_2(%arg0: i32, %arg1: i32) -> (i32, i32) {
    %c0_i32 = arith.constant 0 : i32
    %c0_i32_0 = arith.constant 0 : i32
    %c0_i32_1 = arith.constant 0 : i32
    return %c0_i32, %c0_i32_0 : i32, i32
  }
  func.func @transform_3(%arg0: i32, %arg1: i32) -> (i32, i32) {
    %c0_i32 = arith.constant 0 : i32
    %c0_i32_0 = arith.constant 0 : i32
    return %arg0, %c0_i32 : i32, i32
  }
}

</mosaic_0001>

<llo_original>
// kernel: graph_conv_forward.1
$region0: #{graph_conv_forward.1}
  #allocation0 [shape = 'u32[]', space=smem, size = 0x4, offset = 0x4, fixed_abs, tag = 'smem constant byte address 0x4 - core index']
  #allocation1 [shape = 'u32[144,128]{1,0:T(1,128)}', space=vmem, size = 0x12000, scoped, tag = 'internal scratch']
  #allocation2 [shape = 'f32[200,128]{1,0:T(8,128)}', space=vmem, size = 0x19000, scoped, tag = 'scratch operand']
  %s0 = inlined_call_operand.vmem [shape: bf16[200,256], index: 0, kind: input, shape index: {}]
  %s1 = inlined_call_operand.vmem [shape: bf16[256,128], index: 1, kind: input, shape index: {}]
  %s2 = inlined_call_operand.vmem [shape: bf16[128,128], index: 2, kind: input, shape index: {}]
  %s3 = inlined_call_operand.vmem [shape: f32[200,128], index: 3, kind: output, shape index: {}]
  %s4 = sld [smem:[#allocation0]]
  $region30: #{graph_conv_forward.1} parent=0
    _
  %s6 = ssub.s32 1, %s4
  %s7 = scalar_select 0, %s6, %s4
  // Predicated region
  $region2: #{graph_conv_forward.1} parent=0 // pred_check
    _
  $region3: #{graph_conv_forward.1} parent=0 // pred_check_branch
    %9 = sbr.rel (0) target = $region5
  $region4: #{graph_conv_forward.1} parent=0 // pred_region
    _
  $region5: #{graph_conv_forward.1} parent=0 // pred_fallthru
    _
  // Predicated region
  $region6: #{graph_conv_forward.1} parent=0 // pred_check
    _
  $region7: #{graph_conv_forward.1} parent=0 // pred_check_branch
    %11 = sbr.rel (0) target = $region9
  $region8: #{graph_conv_forward.1} parent=0 // pred_region
    _
  $region9: #{graph_conv_forward.1} parent=0 // pred_fallthru
    _
  // Predicated region
  $region10: #{graph_conv_forward.1} parent=0 // pred_check
    _
  $region11: #{graph_conv_forward.1} parent=0 // pred_check_branch
    %13 = sbr.rel (0) target = $region13
  $region12: #{graph_conv_forward.1} parent=0 // pred_region
    _
  $region13: #{graph_conv_forward.1} parent=0 // pred_fallthru
    _
  %p15 = scmp.eq.s32.totalorder 0, 0
  // Predicated region
  $region14: #{graph_conv_forward.1} parent=0 // pred_check
    %p16 = pneg %p15
  $region15: #{graph_conv_forward.1} parent=0 // pred_check_branch
    %18 = sbr.rel (%p16) target = $region17
  $region16: #{graph_conv_forward.1} parent=0 // pred_region
    %19 = vst [vmem:[#allocation2] sm:$0xff] 0.0
    %20 = vst [vmem:[#allocation2 + $0x8] sm:$0xff] 0.0
    %21 = vst [vmem:[#allocation2 + $0x10] sm:$0xff] 0.0
    %22 = vst [vmem:[#allocation2 + $0x18] sm:$0xff] 0.0
    %23 = vst [vmem:[#allocation2 + $0x20] sm:$0xff] 0.0
    %24 = vst [vmem:[#allocation2 + $0x28] sm:$0xff] 0.0
    %25 = vst [vmem:[#allocation2 + $0x30] sm:$0xff] 0.0
    %26 = vst [vmem:[#allocation2 + $0x38] sm:$0xff] 0.0
    %27 = vst [vmem:[#allocation2 + $0x40] sm:$0xff] 0.0
    %28 = vst [vmem:[#allocation2 + $0x48] sm:$0xff] 0.0
    %29 = vst [vmem:[#allocation2 + $0x50] sm:$0xff] 0.0
    %30 = vst [vmem:[#allocation2 + $0x58] sm:$0xff] 0.0
    %31 = vst [vmem:[#allocation2 + $0x60] sm:$0xff] 0.0
    %32 = vst [vmem:[#allocation2 + $0x68] sm:$0xff] 0.0
    %33 = vst [vmem:[#allocation2 + $0x70] sm:$0xff] 0.0
    %34 = vst [vmem:[#allocation2 + $0x78] sm:$0xff] 0.0
    %35 = vst [vmem:[#allocation2 + $0x80] sm:$0xff] 0.0
    %36 = vst [vmem:[#allocation2 + $0x88] sm:$0xff] 0.0
    %37 = vst [vmem:[#allocation2 + $0x90] sm:$0xff] 0.0
    %38 = vst [vmem:[#allocation2 + $0x98] sm:$0xff] 0.0
    %39 = vst [vmem:[#allocation2 + $0xa0] sm:$0xff] 0.0
    %40 = vst [vmem:[#allocation2 + $0xa8] sm:$0xff] 0.0
    %41 = vst [vmem:[#allocation2 + $0xb0] sm:$0xff] 0.0
    %42 = vst [vmem:[#allocation2 + $0xb8] sm:$0xff] 0.0
    %43 = vst [vmem:[#allocation2 + $0xc0] sm:$0xff] 0.0
  $region17: #{graph_conv_forward.1} parent=0 // pred_fallthru
    _
  %v44 = vld [vmem:[#allocation2] sm:$0xff]
  %v45 = vld [vmem:[#allocation2 + $0x8] sm:$0xff]
  %v46 = vld [vmem:[#allocation2 + $0x10] sm:$0xff]
  %v47 = vld [vmem:[#allocation2 + $0x18] sm:$0xff]
  %v48 = vld [vmem:[#allocation2 + $0x20] sm:$0xff]
  %v49 = vld [vmem:[#allocation2 + $0x28] sm:$0xff]
  %v50 = vld [vmem:[#allocation2 + $0x30] sm:$0xff]
  %v51 = vld [vmem:[#allocation2 + $0x38] sm:$0xff]
  %v52 = vld [vmem:[#allocation2 + $0x40] sm:$0xff]
  %v53 = vld [vmem:[#allocation2 + $0x48] sm:$0xff]
  %v54 = vld [vmem:[#allocation2 + $0x50] sm:$0xff]
  %v55 = vld [vmem:[#allocation2 + $0x58] sm:$0xff]
  %v56 = vld [vmem:[#allocation2 + $0x60] sm:$0xff]
  %v57 = vld [vmem:[#allocation2 + $0x68] sm:$0xff]
  %v58 = vld [vmem:[#allocation2 + $0x70] sm:$0xff]
  %v59 = vld [vmem:[#allocation2 + $0x78] sm:$0xff]
  %v60 = vld [vmem:[#allocation2 + $0x80] sm:$0xff]
  %v61 = vld [vmem:[#allocation2 + $0x88] sm:$0xff]
  %v62 = vld [vmem:[#allocation2 + $0x90] sm:$0xff]
  %v63 = vld [vmem:[#allocation2 + $0x98] sm:$0xff]
  %v64 = vld [vmem:[#allocation2 + $0xa0] sm:$0xff]
  %v65 = vld [vmem:[#allocation2 + $0xa8] sm:$0xff]
  %v66 = vld [vmem:[#allocation2 + $0xb0] sm:$0xff]
  %v67 = vld [vmem:[#allocation2 + $0xb8] sm:$0xff]
  %v68 = vld [vmem:[#allocation2 + $0xc0] sm:$0xff]
  %v69 = vld [vmem:[%s0] sm:$0xff]
  %v70 = vld [vmem:[%s0 + $0x8] sm:$0xff]
  %v71 = vld [vmem:[%s0 + $0x10] sm:$0xff]
  %v72 = vld [vmem:[%s0 + $0x18] sm:$0xff]
  %v73 = vld [vmem:[%s0 + $0x20] sm:$0xff]
  %v74 = vld [vmem:[%s0 + $0x28] sm:$0xff]
  %v75 = vld [vmem:[%s0 + $0x30] sm:$0xff]
  %v76 = vld [vmem:[%s0 + $0x38] sm:$0xff]
  %v77 = vld [vmem:[%s0 + $0x40] sm:$0xff]
  %v78 = vld [vmem:[%s0 + $0x48] sm:$0xff]
  %v79 = vld [vmem:[%s0 + $0x50] sm:$0xff]
  %v80 = vld [vmem:[%s0 + $0x58] sm:$0xff]
  %v81 = vld [vmem:[%s0 + $0x60] sm:$0xff]
  %v82 = vld [vmem:[%s0 + $0x68] sm:$0xff]
  %v83 = vld [vmem:[%s0 + $0x70] sm:$0xff]
  %v84 = vld [vmem:[%s0 + $0x78] sm:$0xff]
  %v85 = vld [vmem:[%s0 + $0x80] sm:$0xff]
  %v86 = vld [vmem:[%s0 + $0x88] sm:$0xff]
  %v87 = vld [vmem:[%s0 + $0x90] sm:$0xff]
  %v88 = vld [vmem:[%s0 + $0x98] sm:$0xff]
  %v89 = vld [vmem:[%s0 + $0xa0] sm:$0xff]
  %v90 = vld [vmem:[%s0 + $0xa8] sm:$0xff]
  %v91 = vld [vmem:[%s0 + $0xb0] sm:$0xff]
  %v92 = vld [vmem:[%s0 + $0xb8] sm:$0xff]
  %v93 = vld [vmem:[%s0 + $0xc0] sm:$0xff]
  %v94 = vld [vmem:[%s1] sm:$0xf]
  %v95 = vld [vmem:[%s1 + $0x4] sm:$0xf]
  %v96 = vld [vmem:[%s1 + $0x8] sm:$0xf]
  %v97 = vld [vmem:[%s1 + $0xc] sm:$0xf]
  %v98 = vld [vmem:[%s1 + $0x10] sm:$0xf]
  %v99 = vld [vmem:[%s1 + $0x14] sm:$0xf]
  %v100 = vld [vmem:[%s1 + $0x18] sm:$0xf]
  %v101 = vld [vmem:[%s1 + $0x1c] sm:$0xf]
  %v102 = vld [vmem:[%s1 + $0x20] sm:$0xf]
  %v103 = vld [vmem:[%s1 + $0x24] sm:$0xf]
  %v104 = vld [vmem:[%s1 + $0x28] sm:$0xf]
  %v105 = vld [vmem:[%s1 + $0x2c] sm:$0xf]
  %v106 = vld [vmem:[%s1 + $0x30] sm:$0xf]
  %v107 = vld [vmem:[%s1 + $0x34] sm:$0xf]
  %v108 = vld [vmem:[%s1 + $0x38] sm:$0xf]
  %v109 = vld [vmem:[%s1 + $0x3c] sm:$0xf]
  %v110 = vld [vmem:[%s1 + $0x40] sm:$0xf]
  %v111 = vld [vmem:[%s1 + $0x44] sm:$0xf]
  %v112 = vld [vmem:[%s1 + $0x48] sm:$0xf]
  %v113 = vld [vmem:[%s1 + $0x4c] sm:$0xf]
  %v114 = vld [vmem:[%s1 + $0x50] sm:$0xf]
  %v115 = vld [vmem:[%s1 + $0x54] sm:$0xf]
  %v116 = vld [vmem:[%s1 + $0x58] sm:$0xf]
  %v117 = vld [vmem:[%s1 + $0x5c] sm:$0xf]
  %v118 = vld [vmem:[%s1 + $0x60] sm:$0xf]
  %v119 = vld [vmem:[%s1 + $0x64] sm:$0xf]
  %v120 = vld [vmem:[%s1 + $0x68] sm:$0xf]
  %v121 = vld [vmem:[%s1 + $0x6c] sm:$0xf]
  %v122 = vld [vmem:[%s1 + $0x70] sm:$0xf]
  %v123 = vld [vmem:[%s1 + $0x74] sm:$0xf]
  %v124 = vld [vmem:[%s1 + $0x78] sm:$0xf]
  %v125 = vld [vmem:[%s1 + $0x7c] sm:$0xf]
  %v151 = vunpack.c.l.b16 %v69
  %v152 = vunpack.c.h.b16 %v69
  %v153 = vunpack.c.l.b16 %v70
  %v154 = vunpack.c.h.b16 %v70
  %v155 = vunpack.c.l.b16 %v71
  %v156 = vunpack.c.h.b16 %v71
  %v157 = vunpack.c.l.b16 %v72
  %v158 = vunpack.c.h.b16 %v72
  %v159 = vunpack.c.l.b16 %v73
  %v160 = vunpack.c.h.b16 %v73
  %v161 = vunpack.c.l.b16 %v74
  %v162 = vunpack.c.h.b16 %v74
  %v163 = vunpack.c.l.b16 %v75
  %v164 = vunpack.c.h.b16 %v75
  %v165 = vunpack.c.l.b16 %v76
  %v166 = vunpack.c.h.b16 %v76
  %v167 = vunpack.c.l.b16 %v77
  %v168 = vunpack.c.h.b16 %v77
  %v169 = vunpack.c.l.b16 %v78
  %v170 = vunpack.c.h.b16 %v78
  %v171 = vunpack.c.l.b16 %v79
  %v172 = vunpack.c.h.b16 %v79
  %v173 = vunpack.c.l.b16 %v80
  %v174 = vunpack.c.h.b16 %v80
  %v175 = vunpack.c.l.b16 %v81
  %v176 = vunpack.c.h.b16 %v81
  %v177 = vunpack.c.l.b16 %v82
  %v178 = vunpack.c.h.b16 %v82
  %v179 = vunpack.c.l.b16 %v83
  %v180 = vunpack.c.h.b16 %v83
  %v181 = vunpack.c.l.b16 %v84
  %v182 = vunpack.c.h.b16 %v84
  %v183 = vunpack.c.l.b16 %v85
  %v184 = vunpack.c.h.b16 %v85
  %v185 = vunpack.c.l.b16 %v86
  %v186 = vunpack.c.h.b16 %v86
  %v187 = vunpack.c.l.b16 %v87
  %v188 = vunpack.c.h.b16 %v87
  %v189 = vunpack.c.l.b16 %v88
  %v190 = vunpack.c.h.b16 %v88
  %v191 = vunpack.c.l.b16 %v89
  %v192 = vunpack.c.h.b16 %v89
  %v193 = vunpack.c.l.b16 %v90
  %v194 = vunpack.c.h.b16 %v90
  %v195 = vunpack.c.l.b16 %v91
  %v196 = vunpack.c.h.b16 %v91
  %v197 = vunpack.c.l.b16 %v92
  %v198 = vunpack.c.h.b16 %v92
  %v199 = vunpack.c.l.b16 %v93
  %v200 = vunpack.c.h.b16 %v93
  %v201 = vpack.c.b16 %v153, %v151
  %v202 = vpack.c.b16 %v154, %v152
  %v203 = vpack.c.b16 %v157, %v155
  %v204 = vpack.c.b16 %v158, %v156
  %v205 = vpack.c.b16 %v161, %v159
  %v206 = vpack.c.b16 %v162, %v160
  %v207 = vpack.c.b16 %v165, %v163
  %v208 = vpack.c.b16 %v166, %v164
  %v209 = vpack.c.b16 %v169, %v167
  %v210 = vpack.c.b16 %v170, %v168
  %v211 = vpack.c.b16 %v173, %v171
  %v212 = vpack.c.b16 %v174, %v172
  %v213 = vpack.c.b16 %v177, %v175
  %v214 = vpack.c.b16 %v178, %v176
  %v215 = vpack.c.b16 %v181, %v179
  %v216 = vpack.c.b16 %v182, %v180
  %v217 = vpack.c.b16 %v185, %v183
  %v218 = vpack.c.b16 %v186, %v184
  %v219 = vpack.c.b16 %v189, %v187
  %v220 = vpack.c.b16 %v190, %v188
  %v221 = vpack.c.b16 %v193, %v191
  %v222 = vpack.c.b16 %v194, %v192
  %v223 = vpack.c.b16 %v197, %v195
  %v224 = vpack.c.b16 %v198, %v196
  %v225 = vpack.c.b16 %v199, %v199
  %v226 = vpack.c.b16 %v200, %v200
  %v285 = vunpack.c.l.b16 %v94
  %v286 = vunpack.c.l.b16 %v95
  %v287 = vunpack.c.l.b16 %v96
  %v288 = vunpack.c.l.b16 %v97
  %v289 = vunpack.c.l.b16 %v98
  %v290 = vunpack.c.l.b16 %v99
  %v291 = vunpack.c.l.b16 %v100
  %v292 = vunpack.c.l.b16 %v101
  %v293 = vunpack.c.l.b16 %v102
  %v294 = vunpack.c.l.b16 %v103
  %v295 = vunpack.c.l.b16 %v104
  %v296 = vunpack.c.l.b16 %v105
  %v297 = vunpack.c.l.b16 %v106
  %v298 = vunpack.c.l.b16 %v107
  %v299 = vunpack.c.l.b16 %v108
  %v300 = vunpack.c.l.b16 %v109
  %v301 = vunpack.c.l.b16 %v110
  %v302 = vunpack.c.l.b16 %v111
  %v303 = vunpack.c.l.b16 %v112
  %v304 = vunpack.c.l.b16 %v113
  %v305 = vunpack.c.l.b16 %v114
  %v306 = vunpack.c.l.b16 %v115
  %v307 = vunpack.c.l.b16 %v116
  %v308 = vunpack.c.l.b16 %v117
  %v309 = vunpack.c.l.b16 %v118
  %v310 = vunpack.c.l.b16 %v119
  %v311 = vunpack.c.l.b16 %v120
  %v312 = vunpack.c.l.b16 %v121
  %v313 = vunpack.c.l.b16 %v122
  %v314 = vunpack.c.l.b16 %v123
  %v315 = vunpack.c.l.b16 %v124
  %v316 = vunpack.c.l.b16 %v125
  %v317 = vpack.c.b16 %v286, %v285
  %v318 = vpack.c.b16 %v288, %v287
  %v319 = vpack.c.b16 %v290, %v289
  %v320 = vpack.c.b16 %v292, %v291
  %v321 = vpack.c.b16 %v294, %v293
  %v322 = vpack.c.b16 %v296, %v295
  %v323 = vpack.c.b16 %v298, %v297
  %v324 = vpack.c.b16 %v300, %v299
  %v325 = vpack.c.b16 %v302, %v301
  %v326 = vpack.c.b16 %v304, %v303
  %v327 = vpack.c.b16 %v306, %v305
  %v328 = vpack.c.b16 %v308, %v307
  %v329 = vpack.c.b16 %v310, %v309
  %v330 = vpack.c.b16 %v312, %v311
  %v331 = vpack.c.b16 %v314, %v313
  %v332 = vpack.c.b16 %v316, %v315
  %349 = vmatprep.subr.bf16.mxu0 0
  %350 = vmatpush1.bf16.msra.mxu0 %v317
  %351 = vmatprep.subr.bf16.mxu0 0
  %352 = vmatpush1.bf16.msra.mxu0 %v318
  %353 = vmatprep.subr.bf16.mxu0 0
  %354 = vmatpush1.bf16.msra.mxu0 %v319
  %355 = vmatprep.subr.bf16.mxu0 0
  %356 = vmatpush1.bf16.msra.mxu0 %v320
  %357 = vmatprep.subr.bf16.mxu0 0
  %358 = vmatpush1.bf16.msra.mxu0 %v321
  %359 = vmatprep.subr.bf16.mxu0 0
  %360 = vmatpush1.bf16.msra.mxu0 %v322
  %361 = vmatprep.subr.bf16.mxu0 0
  %362 = vmatpush1.bf16.msra.mxu0 %v323
  %363 = vmatprep.subr.bf16.mxu0 0
  %364 = vmatpush1.bf16.msra.mxu0 %v324
  %365 = vmatprep.subr.bf16.mxu0 0
  %366 = vmatpush1.bf16.msra.mxu0 %v325
  %367 = vmatprep.subr.bf16.mxu0 0
  %368 = vmatpush1.bf16.msra.mxu0 %v326
  %369 = vmatprep.subr.bf16.mxu0 0
  %370 = vmatpush1.bf16.msra.mxu0 %v327
  %371 = vmatprep.subr.bf16.mxu0 0
  %372 = vmatpush1.bf16.msra.mxu0 %v328
  %373 = vmatprep.subr.bf16.mxu0 0
  %374 = vmatpush1.bf16.msra.mxu0 %v329
  %375 = vmatprep.subr.bf16.mxu0 0
  %376 = vmatpush1.bf16.msra.mxu0 %v330
  %377 = vmatprep.subr.bf16.mxu0 0
  %378 = vmatpush1.bf16.msra.mxu0 %v331
  %379 = vmatprep.subr.bf16.mxu0 0
  %380 = vmatpush1.bf16.msra.mxu0 %v332
  %381 = vmatprep.mubr.bf16.mxu0 %v202
  %382 = vmatmul.mubr.bf16.gmra.mrb[0].mxu0 %v201
  %v383 = vpop.f32.mrb[0].mxu0
  %v384 = vadd.f32 0.0, %v383
  %v385 = vpop.f32.mrb[0].mxu0
  %v386 = vpop.f32.mrb[0].mxu0
  %v387 = vadd.f32 0.0, %v386
  %v388 = vpop.f32.mrb[0].mxu0
  %389 = vmatprep.mubr.bf16.mxu0 %v204
  %390 = vmatmul.mubr.bf16.gmra.mrb[0].mxu0 %v203
  %v391 = vpop.f32.mrb[0].mxu0
  %v392 = vadd.f32 0.0, %v391
  %v393 = vpop.f32.mrb[0].mxu0
  %v394 = vpop.f32.mrb[0].mxu0
  %v395 = vadd.f32 0.0, %v394
  %v396 = vpop.f32.mrb[0].mxu0
  %397 = vmatprep.mubr.bf16.mxu0 %v206
  %398 = vmatmul.mubr.bf16.gmra.mrb[0].mxu0 %v205
  %v399 = vpop.f32.mrb[0].mxu0
  %v400 = vadd.f32 0.0, %v399
  %v401 = vpop.f32.mrb[0].mxu0
  %v402 = vpop.f32.mrb[0].mxu0
  %v403 = vadd.f32 0.0, %v402
  %v404 = vpop.f32.mrb[0].mxu0
  %405 = vmatprep.mubr.bf16.mxu0 %v208
  %406 = vmatmul.mubr.bf16.gmra.mrb[0].mxu0 %v207
  %v407 = vpop.f32.mrb[0].mxu0
  %v408 = vadd.f32 0.0, %v407
  %v409 = vpop.f32.mrb[0].mxu0
  %v410 = vpop.f32.mrb[0].mxu0
  %v411 = vadd.f32 0.0, %v410
  %v412 = vpop.f32.mrb[0].mxu0
  %413 = vmatprep.mubr.bf16.mxu0 %v210
  %414 = vmatmul.mubr.bf16.gmra.mrb[0].mxu0 %v209
  %v415 = vpop.f32.mrb[0].mxu0
  %v416 = vadd.f32 0.0, %v415
  %v417 = vpop.f32.mrb[0].mxu0
  %v418 = vpop.f32.mrb[0].mxu0
  %v419 = vadd.f32 0.0, %v418
  %v420 = vpop.f32.mrb[0].mxu0
  %421 = vmatprep.mubr.bf16.mxu0 %v212
  %422 = vmatmul.mubr.bf16.gmra.mrb[0].mxu0 %v211
  %v423 = vpop.f32.mrb[0].mxu0
  %v424 = vadd.f32 0.0, %v423
  %v425 = vpop.f32.mrb[0].mxu0
  %v426 = vpop.f32.mrb[0].mxu0
  %v427 = vadd.f32 0.0, %v426
  %v428 = vpop.f32.mrb[0].mxu0
  %429 = vmatprep.mubr.bf16.mxu0 %v214
  %430 = vmatmul.mubr.bf16.gmra.mrb[0].mxu0 %v213
  %v431 = vpop.f32.mrb[0].mxu0
  %v432 = vadd.f32 0.0, %v431
  %v433 = vpop.f32.mrb[0].mxu0
  %v434 = vpop.f32.mrb[0].mxu0
  %v435 = vadd.f32 0.0, %v434
  %v436 = vpop.f32.mrb[0].mxu0
  %437 = vmatprep.mubr.bf16.mxu0 %v216
  %438 = vmatmul.mubr.bf16.gmra.mrb[0].mxu0 %v215
  %v439 = vpop.f32.mrb[0].mxu0
  %v440 = vadd.f32 0.0, %v439
  %v441 = vpop.f32.mrb[0].mxu0
  %v442 = vpop.f32.mrb[0].mxu0
  %v443 = vadd.f32 0.0, %v442
  %v444 = vpop.f32.mrb[0].mxu0
  %445 = vmatprep.mubr.bf16.mxu0 %v218
  %446 = vmatmul.mubr.bf16.gmra.mrb[0].mxu0 %v217
  %v447 = vpop.f32.mrb[0].mxu0
  %v448 = vadd.f32 0.0, %v447
  %v449 = vpop.f32.mrb[0].mxu0
  %v450 = vpop.f32.mrb[0].mxu0
  %v451 = vadd.f32 0.0, %v450
  %v452 = vpop.f32.mrb[0].mxu0
  %453 = vmatprep.mubr.bf16.mxu0 %v220
  %454 = vmatmul.mubr.bf16.gmra.mrb[0].mxu0 %v219
  %v455 = vpop.f32.mrb[0].mxu0
  %v456 = vadd.f32 0.0, %v455
  %v457 = vpop.f32.mrb[0].mxu0
  %v458 = vpop.f32.mrb[0].mxu0
  %v459 = vadd.f32 0.0, %v458
  %v460 = vpop.f32.mrb[0].mxu0
  %461 = vmatprep.mubr.bf16.mxu0 %v222
  %462 = vmatmul.mubr.bf16.gmra.mrb[0].mxu0 %v221
  %v463 = vpop.f32.mrb[0].mxu0
  %v464 = vadd.f32 0.0, %v463
  %v465 = vpop.f32.mrb[0].mxu0
  %v466 = vpop.f32.mrb[0].mxu0
  %v467 = vadd.f32 0.0, %v466
  %v468 = vpop.f32.mrb[0].mxu0
  %469 = vmatprep.mubr.bf16.mxu0 %v224
  %470 = vmatmul.mubr.bf16.gmra.mrb[0].mxu0 %v223
  %v471 = vpop.f32.mrb[0].mxu0
  %v472 = vadd.f32 0.0, %v471
  %v473 = vpop.f32.mrb[0].mxu0
  %v474 = vpop.f32.mrb[0].mxu0
  %v475 = vadd.f32 0.0, %v474
  %v476 = vpop.f32.mrb[0].mxu0
  %477 = vmatprep.mubr.bf16.mxu0 %v226
  %478 = vmatmul.mubr.bf16.gmra.mrb[0].mxu0 %v225
  %v479 = vpop.f32.mrb[0].mxu0
  %v480 = vadd.f32 0.0, %v479
  %v481 = vpop.f32.mrb[0].mxu0
  %v482 = vpop.f32.mrb[0].mxu0
  %v483 = vpop.f32.mrb[0].mxu0
  %484 = vdwg.mxu0
  %v485 = vadd.f32 %v44, %v384
  %v486 = vadd.f32 %v45, %v387
  %v487 = vadd.f32 %v46, %v392
  %v488 = vadd.f32 %v47, %v395
  %v489 = vadd.f32 %v48, %v400
  %v490 = vadd.f32 %v49, %v403
  %v491 = vadd.f32 %v50, %v408
  %v492 = vadd.f32 %v51, %v411
  %v493 = vadd.f32 %v52, %v416
  %v494 = vadd.f32 %v53, %v419
  %v495 = vadd.f32 %v54, %v424
  %v496 = vadd.f32 %v55, %v427
  %v497 = vadd.f32 %v56, %v432
  %v498 = vadd.f32 %v57, %v435
  %v499 = vadd.f32 %v58, %v440
  %v500 = vadd.f32 %v59, %v443
  %v501 = vadd.f32 %v60, %v448
  %v502 = vadd.f32 %v61, %v451
  %v503 = vadd.f32 %v62, %v456
  %v504 = vadd.f32 %v63, %v459
  %v505 = vadd.f32 %v64, %v464
  %v506 = vadd.f32 %v65, %v467
  %v507 = vadd.f32 %v66, %v472
  %v508 = vadd.f32 %v67, %v475
  %v509 = vadd.f32 %v68, %v480
  %510 = vst [vmem:[#allocation2] sm:$0xff] %v485
  %511 = vst [vmem:[#allocation2 + $0x8] sm:$0xff] %v486
  %512 = vst [vmem:[#allocation2 + $0x10] sm:$0xff] %v487
  %513 = vst [vmem:[#allocation2 + $0x18] sm:$0xff] %v488
  %514 = vst [vmem:[#allocation2 + $0x20] sm:$0xff] %v489
  %515 = vst [vmem:[#allocation2 + $0x28] sm:$0xff] %v490
  %516 = vst [vmem:[#allocation2 + $0x30] sm:$0xff] %v491
  %517 = vst [vmem:[#allocation2 + $0x38] sm:$0xff] %v492
  %518 = vst [vmem:[#allocation2 + $0x40] sm:$0xff] %v493
  %519 = vst [vmem:[#allocation2 + $0x48] sm:$0xff] %v494
  %520 = vst [vmem:[#allocation2 + $0x50] sm:$0xff] %v495
  %521 = vst [vmem:[#allocation2 + $0x58] sm:$0xff] %v496
  %522 = vst [vmem:[#allocation2 + $0x60] sm:$0xff] %v497
  %523 = vst [vmem:[#allocation2 + $0x68] sm:$0xff] %v498
  %524 = vst [vmem:[#allocation2 + $0x70] sm:$0xff] %v499
  %525 = vst [vmem:[#allocation2 + $0x78] sm:$0xff] %v500
  %526 = vst [vmem:[#allocation2 + $0x80] sm:$0xff] %v501
  %527 = vst [vmem:[#allocation2 + $0x88] sm:$0xff] %v502
  %528 = vst [vmem:[#allocation2 + $0x90] sm:$0xff] %v503
  %529 = vst [vmem:[#allocation2 + $0x98] sm:$0xff] %v504
  %530 = vst [vmem:[#allocation2 + $0xa0] sm:$0xff] %v505
  %531 = vst [vmem:[#allocation2 + $0xa8] sm:$0xff] %v506
  %532 = vst [vmem:[#allocation2 + $0xb0] sm:$0xff] %v507
  %533 = vst [vmem:[#allocation2 + $0xb8] sm:$0xff] %v508
  %534 = vst [vmem:[#allocation2 + $0xc0] sm:$0xff] %v509
  // Predicated region
  $region18: #{graph_conv_forward.1} parent=0 // pred_check
    %p535 = pneg %p15
  $region19: #{graph_conv_forward.1} parent=0 // pred_check_branch
    %537 = sbr.rel (%p535) target = $region21
  $region20: #{graph_conv_forward.1} parent=0 // pred_region
    %v538 = vld [vmem:[#allocation2] sm:$0xff]
    %v539 = vld [vmem:[#allocation2 + $0x8] sm:$0xff]
    %v540 = vld [vmem:[#allocation2 + $0x10] sm:$0xff]
    %v541 = vld [vmem:[#allocation2 + $0x18] sm:$0xff]
    %v542 = vld [vmem:[#allocation2 + $0x20] sm:$0xff]
    %v543 = vld [vmem:[#allocation2 + $0x28] sm:$0xff]
    %v544 = vld [vmem:[#allocation2 + $0x30] sm:$0xff]
    %v545 = vld [vmem:[#allocation2 + $0x38] sm:$0xff]
    %v546 = vld [vmem:[#allocation2 + $0x40] sm:$0xff]
    %v547 = vld [vmem:[#allocation2 + $0x48] sm:$0xff]
    %v548 = vld [vmem:[#allocation2 + $0x50] sm:$0xff]
    %v549 = vld [vmem:[#allocation2 + $0x58] sm:$0xff]
    %v550 = vld [vmem:[#allocation2 + $0x60] sm:$0xff]
    %v551 = vld [vmem:[#allocation2 + $0x68] sm:$0xff]
    %v552 = vld [vmem:[#allocation2 + $0x70] sm:$0xff]
    %v553 = vld [vmem:[#allocation2 + $0x78] sm:$0xff]
    %v554 = vld [vmem:[#allocation2 + $0x80] sm:$0xff]
    %v555 = vld [vmem:[#allocation2 + $0x88] sm:$0xff]
    %v556 = vld [vmem:[#allocation2 + $0x90] sm:$0xff]
    %v557 = vld [vmem:[#allocation2 + $0x98] sm:$0xff]
    %v558 = vld [vmem:[#allocation2 + $0xa0] sm:$0xff]
    %v559 = vld [vmem:[#allocation2 + $0xa8] sm:$0xff]
    %v560 = vld [vmem:[#allocation2 + $0xb0] sm:$0xff]
    %v561 = vld [vmem:[#allocation2 + $0xb8] sm:$0xff]
    %v562 = vld [vmem:[#allocation2 + $0xc0] sm:$0xff]
    %v563 = vpack.c.bf16 %v539, %v538
    %v564 = vpack.c.bf16 %v541, %v540
    %v565 = vpack.c.bf16 %v543, %v542
    %v566 = vpack.c.bf16 %v545, %v544
    %v567 = vpack.c.bf16 %v547, %v546
    %v568 = vpack.c.bf16 %v549, %v548
    %v569 = vpack.c.bf16 %v551, %v550
    %v570 = vpack.c.bf16 %v553, %v552
    %v571 = vpack.c.bf16 %v555, %v554
    %v572 = vpack.c.bf16 %v557, %v556
    %v573 = vpack.c.bf16 %v559, %v558
    %v574 = vpack.c.bf16 %v561, %v560
    %v575 = vpack.c.bf16 %v562, %v562
    %v576 = vld [vmem:[%s2] sm:$0xf]
    %v577 = vld [vmem:[%s2 + $0x4] sm:$0xf]
    %v578 = vld [vmem:[%s2 + $0x8] sm:$0xf]
    %v579 = vld [vmem:[%s2 + $0xc] sm:$0xf]
    %v580 = vld [vmem:[%s2 + $0x10] sm:$0xf]
    %v581 = vld [vmem:[%s2 + $0x14] sm:$0xf]
    %v582 = vld [vmem:[%s2 + $0x18] sm:$0xf]
    %v583 = vld [vmem:[%s2 + $0x1c] sm:$0xf]
    %v584 = vld [vmem:[%s2 + $0x20] sm:$0xf]
    %v585 = vld [vmem:[%s2 + $0x24] sm:$0xf]
    %v586 = vld [vmem:[%s2 + $0x28] sm:$0xf]
    %v587 = vld [vmem:[%s2 + $0x2c] sm:$0xf]
    %v588 = vld [vmem:[%s2 + $0x30] sm:$0xf]
    %v589 = vld [vmem:[%s2 + $0x34] sm:$0xf]
    %v590 = vld [vmem:[%s2 + $0x38] sm:$0xf]
    %v591 = vld [vmem:[%s2 + $0x3c] sm:$0xf]
    %v608 = vunpack.c.l.b16 %v576
    %v609 = vunpack.c.l.b16 %v577
    %v610 = vunpack.c.l.b16 %v578
    %v611 = vunpack.c.l.b16 %v579
    %v612 = vunpack.c.l.b16 %v580
    %v613 = vunpack.c.l.b16 %v581
    %v614 = vunpack.c.l.b16 %v582
    %v615 = vunpack.c.l.b16 %v583
    %v616 = vunpack.c.l.b16 %v584
    %v617 = vunpack.c.l.b16 %v585
    %v618 = vunpack.c.l.b16 %v586
    %v619 = vunpack.c.l.b16 %v587
    %v620 = vunpack.c.l.b16 %v588
    %v621 = vunpack.c.l.b16 %v589
    %v622 = vunpack.c.l.b16 %v590
    %v623 = vunpack.c.l.b16 %v591
    %v624 = vpack.c.b16 %v609, %v608
    %v625 = vpack.c.b16 %v611, %v610
    %v626 = vpack.c.b16 %v613, %v612
    %v627 = vpack.c.b16 %v615, %v614
    %v628 = vpack.c.b16 %v617, %v616
    %v629 = vpack.c.b16 %v619, %v618
    %v630 = vpack.c.b16 %v621, %v620
    %v631 = vpack.c.b16 %v623, %v622
    %640 = vmatprep.subr.bf16.mxu0 0
    %641 = vmatpush1.bf16.msra.mxu0 %v624
    %642 = vmatprep.subr.bf16.mxu0 0
    %643 = vmatpush1.bf16.msra.mxu0 %v625
    %644 = vmatprep.subr.bf16.mxu0 0
    %645 = vmatpush1.bf16.msra.mxu0 %v626
    %646 = vmatprep.subr.bf16.mxu0 0
    %647 = vmatpush1.bf16.msra.mxu0 %v627
    %648 = vmatprep.subr.bf16.mxu0 0
    %649 = vmatpush1.bf16.msra.mxu0 %v628
    %650 = vmatprep.subr.bf16.mxu0 0
    %651 = vmatpush1.bf16.msra.mxu0 %v629
    %652 = vmatprep.subr.bf16.mxu0 0
    %653 = vmatpush1.bf16.msra.mxu0 %v630
    %654 = vmatprep.subr.bf16.mxu0 0
    %655 = vmatpush1.bf16.msra.mxu0 %v631
    %656 = vmatprep.subr.bf16.mxu0 0
    %657 = vmatpush1.bf16.msra.mxu0 0
    %658 = vmatprep.subr.bf16.mxu0 0
    %659 = vmatpush1.bf16.msra.mxu0 0
    %660 = vmatprep.subr.bf16.mxu0 0
    %661 = vmatpush1.bf16.msra.mxu0 0
    %662 = vmatprep.subr.bf16.mxu0 0
    %663 = vmatpush1.bf16.msra.mxu0 0
    %664 = vmatprep.subr.bf16.mxu0 0
    %665 = vmatpush1.bf16.msra.mxu0 0
    %666 = vmatprep.subr.bf16.mxu0 0
    %667 = vmatpush1.bf16.msra.mxu0 0
    %668 = vmatprep.subr.bf16.mxu0 0
    %669 = vmatpush1.bf16.msra.mxu0 0
    %670 = vmatprep.subr.bf16.mxu0 0
    %671 = vmatpush1.bf16.msra.mxu0 0
    %672 = vmatprep.mubr.bf16.mxu0 0
    %673 = vmatmul.mubr.bf16.gmra.mrb[0].mxu0 %v563
    %v674 = vpop.f32.mrb[0].mxu0
    %v675 = vadd.f32 0.0, %v674
    %v676 = vpop.f32.mrb[0].mxu0
    %v677 = vpop.f32.mrb[0].mxu0
    %v678 = vadd.f32 0.0, %v677
    %v679 = vpop.f32.mrb[0].mxu0
    %680 = vmatprep.mubr.bf16.mxu0 0
    %681 = vmatmul.mubr.bf16.gmra.mrb[0].mxu0 %v564
    %v682 = vpop.f32.mrb[0].mxu0
    %v683 = vadd.f32 0.0, %v682
    %v684 = vpop.f32.mrb[0].mxu0
    %v685 = vpop.f32.mrb[0].mxu0
    %v686 = vadd.f32 0.0, %v685
    %v687 = vpop.f32.mrb[0].mxu0
    %688 = vmatprep.mubr.bf16.mxu0 0
    %689 = vmatmul.mubr.bf16.gmra.mrb[0].mxu0 %v565
    %v690 = vpop.f32.mrb[0].mxu0
    %v691 = vadd.f32 0.0, %v690
    %v692 = vpop.f32.mrb[0].mxu0
    %v693 = vpop.f32.mrb[0].mxu0
    %v694 = vadd.f32 0.0, %v693
    %v695 = vpop.f32.mrb[0].mxu0
    %696 = vmatprep.mubr.bf16.mxu0 0
    %697 = vmatmul.mubr.bf16.gmra.mrb[0].mxu0 %v566
    %v698 = vpop.f32.mrb[0].mxu0
    %v699 = vadd.f32 0.0, %v698
    %v700 = vpop.f32.mrb[0].mxu0
    %v701 = vpop.f32.mrb[0].mxu0
    %v702 = vadd.f32 0.0, %v701
    %v703 = vpop.f32.mrb[0].mxu0
    %704 = vmatprep.mubr.bf16.mxu0 0
    %705 = vmatmul.mubr.bf16.gmra.mrb[0].mxu0 %v567
    %v706 = vpop.f32.mrb[0].mxu0
    %v707 = vadd.f32 0.0, %v706
    %v708 = vpop.f32.mrb[0].mxu0
    %v709 = vpop.f32.mrb[0].mxu0
    %v710 = vadd.f32 0.0, %v709
    %v711 = vpop.f32.mrb[0].mxu0
    %712 = vmatprep.mubr.bf16.mxu0 0
    %713 = vmatmul.mubr.bf16.gmra.mrb[0].mxu0 %v568
    %v714 = vpop.f32.mrb[0].mxu0
    %v715 = vadd.f32 0.0, %v714
    %v716 = vpop.f32.mrb[0].mxu0
    %v717 = vpop.f32.mrb[0].mxu0
    %v718 = vadd.f32 0.0, %v717
    %v719 = vpop.f32.mrb[0].mxu0
    %720 = vmatprep.mubr.bf16.mxu0 0
    %721 = vmatmul.mubr.bf16.gmra.mrb[0].mxu0 %v569
    %v722 = vpop.f32.mrb[0].mxu0
    %v723 = vadd.f32 0.0, %v722
    %v724 = vpop.f32.mrb[0].mxu0
    %v725 = vpop.f32.mrb[0].mxu0
    %v726 = vadd.f32 0.0, %v725
    %v727 = vpop.f32.mrb[0].mxu0
    %728 = vmatprep.mubr.bf16.mxu0 0
    %729 = vmatmul.mubr.bf16.gmra.mrb[0].mxu0 %v570
    %v730 = vpop.f32.mrb[0].mxu0
    %v731 = vadd.f32 0.0, %v730
    %v732 = vpop.f32.mrb[0].mxu0
    %v733 = vpop.f32.mrb[0].mxu0
    %v734 = vadd.f32 0.0, %v733
    %v735 = vpop.f32.mrb[0].mxu0
    %736 = vmatprep.mubr.bf16.mxu0 0
    %737 = vmatmul.mubr.bf16.gmra.mrb[0].mxu0 %v571
    %v738 = vpop.f32.mrb[0].mxu0
    %v739 = vadd.f32 0.0, %v738
    %v740 = vpop.f32.mrb[0].mxu0
    %v741 = vpop.f32.mrb[0].mxu0
    %v742 = vadd.f32 0.0, %v741
    %v743 = vpop.f32.mrb[0].mxu0
    %744 = vmatprep.mubr.bf16.mxu0 0
    %745 = vmatmul.mubr.bf16.gmra.mrb[0].mxu0 %v572
    %v746 = vpop.f32.mrb[0].mxu0
    %v747 = vadd.f32 0.0, %v746
    %v748 = vpop.f32.mrb[0].mxu0
    %v749 = vpop.f32.mrb[0].mxu0
    %v750 = vadd.f32 0.0, %v749
    %v751 = vpop.f32.mrb[0].mxu0
    %752 = vmatprep.mubr.bf16.mxu0 0
    %753 = vmatmul.mubr.bf16.gmra.mrb[0].mxu0 %v573
    %v754 = vpop.f32.mrb[0].mxu0
    %v755 = vadd.f32 0.0, %v754
    %v756 = vpop.f32.mrb[0].mxu0
    %v757 = vpop.f32.mrb[0].mxu0
    %v758 = vadd.f32 0.0, %v757
    %v759 = vpop.f32.mrb[0].mxu0
    %760 = vmatprep.mubr.bf16.mxu0 0
    %761 = vmatmul.mubr.bf16.gmra.mrb[0].mxu0 %v574
    %v762 = vpop.f32.mrb[0].mxu0
    %v763 = vadd.f32 0.0, %v762
    %v764 = vpop.f32.mrb[0].mxu0
    %v765 = vpop.f32.mrb[0].mxu0
    %v766 = vadd.f32 0.0, %v765
    %v767 = vpop.f32.mrb[0].mxu0
    %768 = vmatprep.mubr.bf16.mxu0 0
    %769 = vmatmul.mubr.bf16.gmra.mrb[0].mxu0 %v575
    %v770 = vpop.f32.mrb[0].mxu0
    %v771 = vadd.f32 0.0, %v770
    %v772 = vpop.f32.mrb[0].mxu0
    %v773 = vpop.f32.mrb[0].mxu0
    %v774 = vpop.f32.mrb[0].mxu0
    %775 = vdwg.mxu0
    %776 = vst [vmem:[%s3] sm:$0xff] %v675
    %777 = vst [vmem:[%s3 + $0x8] sm:$0xff] %v678
    %778 = vst [vmem:[%s3 + $0x10] sm:$0xff] %v683
    %779 = vst [vmem:[%s3 + $0x18] sm:$0xff] %v686
    %780 = vst [vmem:[%s3 + $0x20] sm:$0xff] %v691
    %781 = vst [vmem:[%s3 + $0x28] sm:$0xff] %v694
    %782 = vst [vmem:[%s3 + $0x30] sm:$0xff] %v699
    %783 = vst [vmem:[%s3 + $0x38] sm:$0xff] %v702
    %784 = vst [vmem:[%s3 + $0x40] sm:$0xff] %v707
    %785 = vst [vmem:[%s3 + $0x48] sm:$0xff] %v710
    %786 = vst [vmem:[%s3 + $0x50] sm:$0xff] %v715
    %787 = vst [vmem:[%s3 + $0x58] sm:$0xff] %v718
    %788 = vst [vmem:[%s3 + $0x60] sm:$0xff] %v723
    %789 = vst [vmem:[%s3 + $0x68] sm:$0xff] %v726
    %790 = vst [vmem:[%s3 + $0x70] sm:$0xff] %v731
    %791 = vst [vmem:[%s3 + $0x78] sm:$0xff] %v734
    %792 = vst [vmem:[%s3 + $0x80] sm:$0xff] %v739
    %793 = vst [vmem:[%s3 + $0x88] sm:$0xff] %v742
    %794 = vst [vmem:[%s3 + $0x90] sm:$0xff] %v747
    %795 = vst [vmem:[%s3 + $0x98] sm:$0xff] %v750
    %796 = vst [vmem:[%s3 + $0xa0] sm:$0xff] %v755
    %797 = vst [vmem:[%s3 + $0xa8] sm:$0xff] %v758
    %798 = vst [vmem:[%s3 + $0xb0] sm:$0xff] %v763
    %799 = vst [vmem:[%s3 + $0xb8] sm:$0xff] %v766
    %800 = vst [vmem:[%s3 + $0xc0] sm:$0xff] %v771
  $region21: #{graph_conv_forward.1} parent=0 // pred_fallthru
    _
  // Predicated region
  $region22: #{graph_conv_forward.1} parent=0 // pred_check
    _
  $region23: #{graph_conv_forward.1} parent=0 // pred_check_branch
    %802 = sbr.rel (0) target = $region25
  $region24: #{graph_conv_forward.1} parent=0 // pred_region
    _
  $region25: #{graph_conv_forward.1} parent=0 // pred_fallthru
    _
  // Predicated region
  $region26: #{graph_conv_forward.1} parent=0 // pred_check
    _
  $region27: #{graph_conv_forward.1} parent=0 // pred_check_branch
    %804 = sbr.rel (0) target = $region29
  $region28: #{graph_conv_forward.1} parent=0 // pred_region
    _
  $region29: #{graph_conv_forward.1} parent=0 // pred_fallthru
    _

</llo_original>
